<compile_context>
chip_gen: v5e
topology: v5e:2x2
jax: 0.10.0
libtpu: 0.0.40
codegen_flags: <defaults>
</compile_context>

<pallas_src>
import functools

import jax
import jax.numpy as jnp
from jax.experimental import pallas as pl
from jax.experimental.pallas import tpu as pltpu


LN_EPS = 1e-5  # PyTorch nn.LayerNorm default


def _round_up(x, m):
    return (x + m - 1) // m * m


def _decoder_kernel(*refs, n_hidden, apply_relu, eps, compute_dtype):
    """Fully fused decoder forward for one batch tile.

    refs layout:
      [ x,
        (gamma, beta, W, b) * n_hidden,        # hidden FF stack (relu/linear)
        W_heads, b_heads,                      # fused (spect|pcm) head, LN affine pre-folded
        out, mask ]                            # outputs (lane-dense, padded last dim)
    """
    x_ref = refs[0]
    w_heads_ref = refs[1 + 4 * n_hidden]
    b_heads_ref = refs[2 + 4 * n_hidden]
    out_ref = refs[3 + 4 * n_hidden]
    mask_ref = refs[4 + 4 * n_hidden]

    def layernorm_core(v):
        # biased variance + eps inside rsqrt, matching torch.nn.LayerNorm; f32.
        mean = jnp.mean(v, axis=-1, keepdims=True)
        centered = v - mean
        var = jnp.mean(centered * centered, axis=-1, keepdims=True)
        return centered * jax.lax.rsqrt(var + eps)

    x = x_ref[...].astype(jnp.float32)                      # (TB, d_latent)

    # Hidden FF stack: LayerNorm -> Linear -> activation, chained in registers.
    for l in range(n_hidden):
        gamma = refs[1 + 4 * l][...]
        beta = refs[2 + 4 * l][...]
        w = refs[3 + 4 * l][...]
        b = refs[4 + 4 * l][...]
        z = layernorm_core(x) * gamma + beta
        y = jnp.dot(z.astype(compute_dtype), w.astype(compute_dtype),
                    preferred_element_type=jnp.float32) + b
        if apply_relu:
            y = jnp.maximum(y, 0.0)
        x = y

    # Fused heads: shared LN statistics; per-head gamma/beta already folded
    # into W_heads/b_heads by the wrapper, so one lane-dense matmul suffices.
    z = layernorm_core(x)
    y = jnp.dot(z.astype(compute_dtype), w_heads_ref[...].astype(compute_dtype),
                preferred_element_type=jnp.float32) + b_heads_ref[...]
    out_ref[...] = y.astype(out_ref.dtype)

    # mask = ones_like(spect) generated in-kernel (padded, sliced in wrapper).
    mask_ref[...] = jnp.ones(mask_ref.shape, dtype=mask_ref.dtype)


def decoder_forward(latents, params, activation="relu", *,
                    batch_tile=128, matmul_dtype=jnp.float32):
    """Fused Decoder.forward.  Returns ([spect, pcm], mask) or ([x], mask)."""
    assert activation in ("relu", "linear")
    B, d_lat = latents.shape
    hiddens = params["hiddens"]
    n_hidden = len(hiddens)
    spect_p = params["spect"]
    pcm_p = params["pcm"]
    spect_size = spect_p["w"].shape[1]

    # ---- fold each head's LayerNorm affine into its Linear, concat, pad ----
    # (z*g + be) @ W + b  ==  z @ (diag(g) W) + (be @ W + b)
    def fold(p):
        w = p["gamma"][:, None] * p["w"]                    # (d_h, d_out)
        b = p["beta"] @ p["w"] + p["b"]                     # (d_out,)
        return w, b

    w_s, b_s = fold(spect_p)
    if pcm_p is not None:
        w_pcm, b_pcm = fold(pcm_p)
        w_heads = jnp.concatenate([w_s, w_pcm], axis=1)
        b_heads = jnp.concatenate([b_s, b_pcm], axis=0)
    else:
        w_heads, b_heads = w_s, b_s
    d_heads = w_heads.shape[1]
    d_pad = _round_up(d_heads, 128)                          # lane-dense output
    m_pad = _round_up(spect_size, 128)                       # lane-dense mask
    w_heads = jnp.pad(w_heads, ((0, 0), (0, d_pad - d_heads)))
    b_heads = jnp.pad(b_heads, (0, d_pad - d_heads)).reshape(1, d_pad)
    d_h = w_heads.shape[0]

    # ---- batch tiling: pad B instead of asserting divisibility ----
    bt = min(batch_tile, _round_up(B, 8))
    B_pad = _round_up(B, bt)
    x = latents if B_pad == B else jnp.pad(latents, ((0, B_pad - B), (0, 0)))

    inputs = [x]
    in_specs = [pl.BlockSpec((bt, d_lat), lambda i: (i, 0))]
    for p in hiddens:
        d_in, d_out = p["w"].shape
        inputs += [p["gamma"].reshape(1, d_in), p["beta"].reshape(1, d_in),
                   p["w"], p["b"].reshape(1, d_out)]
        # Constant operands (index_map -> (0,0)); tiny, so default buffering is
        # irrelevant even under v7x's 64 MiB VMEM.
        in_specs += [
            pl.BlockSpec((1, d_in), lambda i: (0, 0)),
            pl.BlockSpec((1, d_in), lambda i: (0, 0)),
            pl.BlockSpec((d_in, d_out), lambda i: (0, 0)),
            pl.BlockSpec((1, d_out), lambda i: (0, 0)),
        ]
    inputs += [w_heads, b_heads]
    in_specs += [pl.BlockSpec((d_h, d_pad), lambda i: (0, 0)),
                 pl.BlockSpec((1, d_pad), lambda i: (0, 0))]

    kernel = functools.partial(
        _decoder_kernel, n_hidden=n_hidden,
        apply_relu=(activation == "relu"), eps=LN_EPS,
        compute_dtype=matmul_dtype)

    out, mask = pl.pallas_call(
        kernel,
        out_shape=(jax.ShapeDtypeStruct((B_pad, d_pad), latents.dtype),
                   jax.ShapeDtypeStruct((B_pad, m_pad), latents.dtype)),
        grid_spec=pltpu.PrefetchScalarGridSpec(
            num_scalar_prefetch=0,
            grid=(B_pad // bt,),
            in_specs=in_specs,
            out_specs=(pl.BlockSpec((bt, d_pad), lambda i: (i, 0)),
                       pl.BlockSpec((bt, m_pad), lambda i: (i, 0))),
        ),
        compiler_params=pltpu.CompilerParams(
            dimension_semantics=("parallel",)),
    )(*inputs)

    mask_out = mask[:B, :spect_size]
    if pcm_p is not None:
        spect_out = out[:B, :spect_size]
        pcm_out = out[:B, spect_size:d_heads]
        return [spect_out, pcm_out], mask_out
    return [out[:B, :spect_size]], mask_out


# ---------------------------------------------------------------------------
# Decoder parameter construction (plain JAX; mirrors PyTorch layer shapes)
# ---------------------------------------------------------------------------

def init_fflayer_params(key, d_in, d_out):
    k_w, k_b = jax.random.split(key)
    bound = 1.0 / jnp.sqrt(d_in)
    # PyTorch Linear weight is (out, in); stored transposed as (in, out).
    w = jax.random.uniform(k_w, (d_in, d_out), jnp.float32, -bound, bound)
    b = jax.random.uniform(k_b, (d_out,), jnp.float32, -bound, bound)
    gamma = jnp.ones((d_in,), jnp.float32)   # LayerNorm weight default
    beta = jnp.zeros((d_in,), jnp.float32)   # LayerNorm bias default
    return {"gamma": gamma, "beta": beta, "w": w, "b": b}


def init_decoder_params(key, latent_size, hidden_sizes, spect_size, pcm_size):
    sizes = [latent_size] + list(hidden_sizes)
    params = {"hiddens": [], "spect": None, "pcm": None}
    keys = jax.random.split(key, len(sizes) + 2)
    for i, _ in enumerate(sizes[:-2]):                       # hidden stack
        params["hiddens"].append(
            init_fflayer_params(keys[i], sizes[i], sizes[i + 1]))
    params["spect"] = init_fflayer_params(keys[-2], sizes[-1], spect_size)
    if pcm_size is not None:
        params["pcm"] = init_fflayer_params(keys[-1], sizes[-1], pcm_size)
    return params


# ---------------------------------------------------------------------------
# Pure-JAX reference (for in-script correctness check)
# ---------------------------------------------------------------------------

def _ref_fflayer(x, p, relu):
    mean = jnp.mean(x, axis=-1, keepdims=True)
    var = jnp.mean((x - mean) ** 2, axis=-1, keepdims=True)
    z = (x - mean) * jax.lax.rsqrt(var + LN_EPS) * p["gamma"] + p["beta"]
    y = z @ p["w"] + p["b"]
    return jnp.maximum(y, 0.0) if relu else y


def _ref_decoder(latents, params):
    x = latents
    for p in params["hiddens"]:
        x = _ref_fflayer(x, p, True)
    spect = _ref_fflayer(x, params["spect"], False)
    pcm = _ref_fflayer(x, params["pcm"], False)
    return spect, pcm


if __name__ == "__main__":
    # Small, module-consistent sizes.  Original code requires
    # sizes[-1] == sizes[-2] (heads read sizes[-1]); hidden_sizes = [32, 32].
    latent_size = 16
    hidden_sizes = [32, 32]
    spect_size = 24
    pcm_size = 48
    batch = 10            # deliberately NOT a tile multiple -> exercises padding

    key = jax.random.PRNGKey(0)
    k_params, k_latents, k_g, k_b = jax.random.split(key, 4)

    params = init_decoder_params(k_params, latent_size, hidden_sizes,
                                 spect_size, pcm_size)
    # Perturb the head LayerNorm affines so the gamma/beta -> weight folding
    # path is actually exercised (PyTorch default would be ones/zeros).
    for name, kk in (("spect", k_g), ("pcm", k_b)):
        p = params[name]
        k1, k2 = jax.random.split(kk)
        p["gamma"] = p["gamma"] + 0.1 * jax.random.normal(k1, p["gamma"].shape)
        p["beta"] = 0.1 * jax.random.normal(k2, p["beta"].shape)

    latents = jax.random.normal(k_latents, (batch, latent_size), jnp.float32)

    fwd = jax.jit(functools.partial(decoder_forward, activation="relu"))
    (spect, pcm), mask = fwd(latents, params)
    jax.block_until_ready((spect, pcm, mask))

    assert spect.shape == (batch, spect_size)
    assert pcm.shape == (batch, pcm_size)
    assert mask.shape == spect.shape

    spect_ref, pcm_ref = _ref_decoder(latents, params)
    assert jnp.allclose(spect, spect_ref, rtol=1e-4, atol=1e-4)
    assert jnp.allclose(pcm, pcm_ref, rtol=1e-4, atol=1e-4)
    assert bool(jnp.all(mask == 1.0))

    print("KERNEL_OK")
</pallas_src>

<mosaic_0001>
module attributes {stable_mosaic.version = 11 : i64} {
  func.func @_decoder_kernel(%arg0: i32, %arg1: memref<16x16xf32, #tpu.memory_space<vmem>>, %arg2: memref<1x16xf32, #tpu.memory_space<vmem>>, %arg3: memref<1x16xf32, #tpu.memory_space<vmem>>, %arg4: memref<16x32xf32, #tpu.memory_space<vmem>>, %arg5: memref<1x32xf32, #tpu.memory_space<vmem>>, %arg6: memref<32x128xf32, #tpu.memory_space<vmem>>, %arg7: memref<1x128xf32, #tpu.memory_space<vmem>>, %arg8: memref<16x128xf32, #tpu.memory_space<vmem>>, %arg9: memref<16x128xf32, #tpu.memory_space<vmem>>) attributes {dimension_semantics = [#tpu.dimension_semantics<parallel>], iteration_bounds = array<i64: 1>, scalar_prefetch = 0 : i64, scratch_operands = 0 : i64, tpu.core_type = #tpu.core_type<tc>, window_params = [{transform_indices = @transform_0, window_bounds = array<i64: 16, 16>}, {pipeline_mode = #tpu.pipeline_mode<synchronous>, transform_indices = @transform_1, window_bounds = array<i64: 1, 16>}, {pipeline_mode = #tpu.pipeline_mode<synchronous>, transform_indices = @transform_2, window_bounds = array<i64: 1, 16>}, {pipeline_mode = #tpu.pipeline_mode<synchronous>, transform_indices = @transform_3, window_bounds = array<i64: 16, 32>}, {pipeline_mode = #tpu.pipeline_mode<synchronous>, transform_indices = @transform_4, window_bounds = array<i64: 1, 32>}, {pipeline_mode = #tpu.pipeline_mode<synchronous>, transform_indices = @transform_5, window_bounds = array<i64: 32, 128>}, {pipeline_mode = #tpu.pipeline_mode<synchronous>, transform_indices = @transform_6, window_bounds = array<i64: 1, 128>}, {transform_indices = @transform_7, window_bounds = array<i64: 16, 128>}, {transform_indices = @transform_8, window_bounds = array<i64: 16, 128>}]} {
    %c0 = arith.constant 0 : index
    %c0_0 = arith.constant 0 : index
    %0 = vector.load %arg1[%c0, %c0_0] : memref<16x16xf32, #tpu.memory_space<vmem>>, vector<16x16xf32>
    %c0_1 = arith.constant 0 : index
    %c0_2 = arith.constant 0 : index
    %1 = vector.load %arg2[%c0_1, %c0_2] : memref<1x16xf32, #tpu.memory_space<vmem>>, vector<1x16xf32>
    %c0_3 = arith.constant 0 : index
    %c0_4 = arith.constant 0 : index
    %2 = vector.load %arg3[%c0_3, %c0_4] : memref<1x16xf32, #tpu.memory_space<vmem>>, vector<1x16xf32>
    %c0_5 = arith.constant 0 : index
    %c0_6 = arith.constant 0 : index
    %3 = vector.load %arg4[%c0_5, %c0_6] : memref<16x32xf32, #tpu.memory_space<vmem>>, vector<16x32xf32>
    %c0_7 = arith.constant 0 : index
    %c0_8 = arith.constant 0 : index
    %4 = vector.load %arg5[%c0_7, %c0_8] : memref<1x32xf32, #tpu.memory_space<vmem>>, vector<1x32xf32>
    %cst = arith.constant dense<0.000000e+00> : vector<16xf32>
    %5 = vector.multi_reduction <add>, %0, %cst [1] : vector<16x16xf32> to vector<16xf32>
    %6 = vector.shape_cast %5 : vector<16xf32> to vector<16x1xf32>
    %cst_9 = arith.constant 1.600000e+01 : f32
    %7 = vector.broadcast %cst_9 : f32 to vector<16x1xf32>
    %8 = arith.divf %6, %7 : vector<16x1xf32>
    %9 = vector.broadcast %8 : vector<16x1xf32> to vector<16x16xf32>
    %10 = arith.subf %0, %9 : vector<16x16xf32>
    %11 = arith.mulf %10, %10 : vector<16x16xf32>
    %cst_10 = arith.constant dense<0.000000e+00> : vector<16xf32>
    %12 = vector.multi_reduction <add>, %11, %cst_10 [1] : vector<16x16xf32> to vector<16xf32>
    %13 = vector.shape_cast %12 : vector<16xf32> to vector<16x1xf32>
    %cst_11 = arith.constant 1.600000e+01 : f32
    %14 = vector.broadcast %cst_11 : f32 to vector<16x1xf32>
    %15 = arith.divf %13, %14 : vector<16x1xf32>
    %cst_12 = arith.constant 9.99999974E-6 : f32
    %16 = vector.broadcast %cst_12 : f32 to vector<16x1xf32>
    %17 = arith.addf %15, %16 : vector<16x1xf32>
    %18 = math.rsqrt %17 : vector<16x1xf32>
    %19 = vector.broadcast %18 : vector<16x1xf32> to vector<16x16xf32>
    %20 = arith.mulf %10, %19 : vector<16x16xf32>
    %21 = vector.broadcast %1 : vector<1x16xf32> to vector<16x16xf32>
    %22 = arith.mulf %20, %21 : vector<16x16xf32>
    %23 = vector.broadcast %2 : vector<1x16xf32> to vector<16x16xf32>
    %24 = arith.addf %22, %23 : vector<16x16xf32>
    %cst_13 = arith.constant dense<0.000000e+00> : vector<16x32xf32>
    %25 = tpu.matmul %24, %3, %cst_13 {dimension_numbers = #tpu.dot_dimension_numbers<[1], [0], [0], [1], [0, 0, 1, 1], [], []>} : vector<16x16xf32>, vector<16x32xf32>, vector<16x32xf32> -> vector<16x32xf32>
    %26 = vector.broadcast %4 : vector<1x32xf32> to vector<16x32xf32>
    %27 = arith.addf %25, %26 : vector<16x32xf32>
    %cst_14 = arith.constant 0.000000e+00 : f32
    %28 = vector.broadcast %cst_14 : f32 to vector<16x32xf32>
    %29 = arith.maximumf %27, %28 : vector<16x32xf32>
    %cst_15 = arith.constant dense<0.000000e+00> : vector<16xf32>
    %30 = vector.multi_reduction <add>, %29, %cst_15 [1] : vector<16x32xf32> to vector<16xf32>
    %31 = vector.shape_cast %30 : vector<16xf32> to vector<16x1xf32>
    %cst_16 = arith.constant 3.200000e+01 : f32
    %32 = vector.broadcast %cst_16 : f32 to vector<16x1xf32>
    %33 = arith.divf %31, %32 : vector<16x1xf32>
    %34 = vector.broadcast %33 : vector<16x1xf32> to vector<16x32xf32>
    %35 = arith.subf %29, %34 : vector<16x32xf32>
    %36 = arith.mulf %35, %35 : vector<16x32xf32>
    %cst_17 = arith.constant dense<0.000000e+00> : vector<16xf32>
    %37 = vector.multi_reduction <add>, %36, %cst_17 [1] : vector<16x32xf32> to vector<16xf32>
    %38 = vector.shape_cast %37 : vector<16xf32> to vector<16x1xf32>
    %cst_18 = arith.constant 3.200000e+01 : f32
    %39 = vector.broadcast %cst_18 : f32 to vector<16x1xf32>
    %40 = arith.divf %38, %39 : vector<16x1xf32>
    %cst_19 = arith.constant 9.99999974E-6 : f32
    %41 = vector.broadcast %cst_19 : f32 to vector<16x1xf32>
    %42 = arith.addf %40, %41 : vector<16x1xf32>
    %43 = math.rsqrt %42 : vector<16x1xf32>
    %44 = vector.broadcast %43 : vector<16x1xf32> to vector<16x32xf32>
    %45 = arith.mulf %35, %44 : vector<16x32xf32>
    %c0_20 = arith.constant 0 : index
    %c0_21 = arith.constant 0 : index
    %46 = vector.load %arg6[%c0_20, %c0_21] : memref<32x128xf32, #tpu.memory_space<vmem>>, vector<32x128xf32>
    %cst_22 = arith.constant dense<0.000000e+00> : vector<16x128xf32>
    %47 = tpu.matmul %45, %46, %cst_22 {dimension_numbers = #tpu.dot_dimension_numbers<[1], [0], [0], [1], [0, 0, 1, 1], [], []>} : vector<16x32xf32>, vector<32x128xf32>, vector<16x128xf32> -> vector<16x128xf32>
    %c0_23 = arith.constant 0 : index
    %c0_24 = arith.constant 0 : index
    %48 = vector.load %arg7[%c0_23, %c0_24] : memref<1x128xf32, #tpu.memory_space<vmem>>, vector<1x128xf32>
    %49 = vector.broadcast %48 : vector<1x128xf32> to vector<16x128xf32>
    %50 = arith.addf %47, %49 : vector<16x128xf32>
    %c0_25 = arith.constant 0 : index
    %c0_26 = arith.constant 0 : index
    %51 = vector.load %arg8[%c0_25, %c0_26] : memref<16x128xf32, #tpu.memory_space<vmem>>, vector<16x128xf32>
    tpu.vector_store %arg8[%c0_25, %c0_26], %50 {strides = array<i32>} : memref<16x128xf32, #tpu.memory_space<vmem>>, vector<16x128xf32>,
    %cst_27 = arith.constant 1.000000e+00 : f32
    %52 = vector.broadcast %cst_27 : f32 to vector<16x128xf32>
    %c0_28 = arith.constant 0 : index
    %c0_29 = arith.constant 0 : index
    %53 = vector.load %arg9[%c0_28, %c0_29] : memref<16x128xf32, #tpu.memory_space<vmem>>, vector<16x128xf32>
    tpu.vector_store %arg9[%c0_28, %c0_29], %52 {strides = array<i32>} : memref<16x128xf32, #tpu.memory_space<vmem>>, vector<16x128xf32>,
    return
  }
  func.func @transform_0(%arg0: i32) -> (i32, i32) {
    %c0_i32 = arith.constant 0 : i32
    %c0_i32_0 = arith.constant 0 : i32
    return %arg0, %c0_i32 : i32, i32
  }
  func.func @transform_1(%arg0: i32) -> (i32, i32) {
    %c0_i32 = arith.constant 0 : i32
    %c0_i32_0 = arith.constant 0 : i32
    %c0_i32_1 = arith.constant 0 : i32
    return %c0_i32, %c0_i32_0 : i32, i32
  }
  func.func @transform_2(%arg0: i32) -> (i32, i32) {
    %c0_i32 = arith.constant 0 : i32
    %c0_i32_0 = arith.constant 0 : i32
    %c0_i32_1 = arith.constant 0 : i32
    return %c0_i32, %c0_i32_0 : i32, i32
  }
  func.func @transform_3(%arg0: i32) -> (i32, i32) {
    %c0_i32 = arith.constant 0 : i32
    %c0_i32_0 = arith.constant 0 : i32
    %c0_i32_1 = arith.constant 0 : i32
    return %c0_i32, %c0_i32_0 : i32, i32
  }
  func.func @transform_4(%arg0: i32) -> (i32, i32) {
    %c0_i32 = arith.constant 0 : i32
    %c0_i32_0 = arith.constant 0 : i32
    %c0_i32_1 = arith.constant 0 : i32
    return %c0_i32, %c0_i32_0 : i32, i32
  }
  func.func @transform_5(%arg0: i32) -> (i32, i32) {
    %c0_i32 = arith.constant 0 : i32
    %c0_i32_0 = arith.constant 0 : i32
    %c0_i32_1 = arith.constant 0 : i32
    return %c0_i32, %c0_i32_0 : i32, i32
  }
  func.func @transform_6(%arg0: i32) -> (i32, i32) {
    %c0_i32 = arith.constant 0 : i32
    %c0_i32_0 = arith.constant 0 : i32
    %c0_i32_1 = arith.constant 0 : i32
    return %c0_i32, %c0_i32_0 : i32, i32
  }
  func.func @transform_7(%arg0: i32) -> (i32, i32) {
    %c0_i32 = arith.constant 0 : i32
    %c0_i32_0 = arith.constant 0 : i32
    return %arg0, %c0_i32 : i32, i32
  }
  func.func @transform_8(%arg0: i32) -> (i32, i32) {
    %c0_i32 = arith.constant 0 : i32
    %c0_i32_0 = arith.constant 0 : i32
    return %arg0, %c0_i32 : i32, i32
  }
}

</mosaic_0001>

<llo_original>
// kernel: decoder_forward.1
$region0: #{decoder_forward.1}
  #allocation0 [shape = 'u32[]', space=smem, size = 0x4, offset = 0x4, fixed_abs, tag = 'smem constant byte address 0x4 - core index']
  #allocation1 [shape = 'u32[72,128]{1,0:T(1,128)}', space=vmem, size = 0x9000, scoped, tag = 'internal scratch']
  %s0 = inlined_call_operand.vmem [shape: f32[16,16], index: 0, kind: input, shape index: {}]
  %s1 = inlined_call_operand.vmem [shape: f32[1,16], index: 1, kind: input, shape index: {}]
  %s2 = inlined_call_operand.vmem [shape: f32[1,16], index: 2, kind: input, shape index: {}]
  %s3 = inlined_call_operand.vmem [shape: f32[16,32], index: 3, kind: input, shape index: {}]
  %s4 = inlined_call_operand.vmem [shape: f32[1,32], index: 4, kind: input, shape index: {}]
  %s5 = inlined_call_operand.vmem [shape: f32[32,128], index: 5, kind: input, shape index: {}]
  %s6 = inlined_call_operand.vmem [shape: f32[1,128], index: 6, kind: input, shape index: {}]
  %s7 = inlined_call_operand.vmem [shape: f32[16,128], index: 7, kind: output, shape index: {0}]
  %s8 = inlined_call_operand.hbm [shape: f32[16,128], index: 8, kind: output, shape index: {1}]
  %9 = xla_tuple %s7, %s8
  %s10 = sld [smem:[#allocation0]]
  $region46: #{decoder_forward.1} parent=0
    _
  %s12 = ssub.s32 1, %s10
  %s13 = scalar_select 0, %s12, %s10
  $region1: #{decoder_forward.1} parent=0
    #allocation2 [shape = 'u8[8192]{0}', space=vmem, size = 0x2000, scoped, tag = 'output window, operand 1, single buffered']
    #allocation3 [shape = 's32[1]{0}', space=sflag, size = 0x4, scoped, tag = 'scoped memory for decoder_forward.1']
    %14 = vsyncpa [#allocation3], 0
    // Predicated region
    $region2: #{decoder_forward.1} parent=1 // pred_check
      _
    $region3: #{decoder_forward.1} parent=1 // pred_check_branch
      %16 = sbr.rel (0) target = $region5
    $region4: #{decoder_forward.1} parent=1 // pred_region
      _
    $region5: #{decoder_forward.1} parent=1 // pred_fallthru
      _
    // Predicated region
    $region6: #{decoder_forward.1} parent=1 // pred_check
      _
    $region7: #{decoder_forward.1} parent=1 // pred_check_branch
      %18 = sbr.rel (0) target = $region9
    $region8: #{decoder_forward.1} parent=1 // pred_region
      _
    $region9: #{decoder_forward.1} parent=1 // pred_fallthru
      _
    // Predicated region
    $region10: #{decoder_forward.1} parent=1 // pred_check
      _
    $region11: #{decoder_forward.1} parent=1 // pred_check_branch
      %20 = sbr.rel (0) target = $region13
    $region12: #{decoder_forward.1} parent=1 // pred_region
      _
    $region13: #{decoder_forward.1} parent=1 // pred_fallthru
      _
    // Predicated region
    $region14: #{decoder_forward.1} parent=1 // pred_check
      _
    $region15: #{decoder_forward.1} parent=1 // pred_check_branch
      %22 = sbr.rel (0) target = $region17
    $region16: #{decoder_forward.1} parent=1 // pred_region
      _
    $region17: #{decoder_forward.1} parent=1 // pred_fallthru
      _
    // Predicated region
    $region18: #{decoder_forward.1} parent=1 // pred_check
      _
    $region19: #{decoder_forward.1} parent=1 // pred_check_branch
      %24 = sbr.rel (0) target = $region21
    $region20: #{decoder_forward.1} parent=1 // pred_region
      _
    $region21: #{decoder_forward.1} parent=1 // pred_fallthru
      _
    // Predicated region
    $region22: #{decoder_forward.1} parent=1 // pred_check
      _
    $region23: #{decoder_forward.1} parent=1 // pred_check_branch
      %26 = sbr.rel (0) target = $region25
    $region24: #{decoder_forward.1} parent=1 // pred_region
      _
    $region25: #{decoder_forward.1} parent=1 // pred_fallthru
      _
    // Predicated region
    $region26: #{decoder_forward.1} parent=1 // pred_check
      _
    $region27: #{decoder_forward.1} parent=1 // pred_check_branch
      %28 = sbr.rel (0) target = $region29
    $region28: #{decoder_forward.1} parent=1 // pred_region
      _
    $region29: #{decoder_forward.1} parent=1 // pred_fallthru
      _
    %v29 = vld [vmem:[%s0] sm:$0xff]
    %v30 = vld [vmem:[%s0 + $0x8] sm:$0xff]
    %v31 = vld [vmem:[%s1] sm:$0x1]
    %v32 = vld [vmem:[%s2] sm:$0x1]
    %v33 = vld [vmem:[%s3] sm:$0xff]
    %v34 = vld [vmem:[%s3 + $0x8] sm:$0xff]
    %v35 = vld [vmem:[%s4] sm:$0x1]
    %vm36 = vcmask 130048
    %v37 = vsel %vm36, %v29, 0.0
    %38 = vadd.xlane.f32.xlu0 %v37
    %v39 = vpop.xlane.xlu0 %38
    %v40 = vsel %vm36, %v30, 0.0
    %41 = vadd.xlane.f32.xlu0 %v40
    %v42 = vpop.xlane.xlu0 %41
    %v43 = vrcp.pop 16.0
    %v44 = vmul.f32 16.0, %v43
    %v45 = vsub.f32 1.0, %v44
    %v46 = vmul.f32 %v43, %v45
    %v47 = vadd.f32 %v43, %v46
    %vm48 = vweird.f32 %v43
    %v49 = vsel %vm48, %v43, %v47
    %v50 = vmul.f32 %v39, %v49
    %v51 = vmul.f32 %v42, %v49
    %v52 = vsub.f32 %v29, %v50
    %v53 = vsub.f32 %v30, %v51
    %v54 = vmul.f32 %v52, %v52
    %v55 = vmul.f32 %v53, %v53
    %v56 = vsel %vm36, %v54, 0.0
    %57 = vadd.xlane.f32.xlu0 %v56
    %v58 = vpop.xlane.xlu0 %57
    %v59 = vsel %vm36, %v55, 0.0
    %60 = vadd.xlane.f32.xlu0 %v59
    %v61 = vpop.xlane.xlu0 %60
    %v62 = vmul.f32 %v58, %v49
    %v63 = vmul.f32 %v61, %v49
    %v64 = vadd.f32 %v62, 1e-05
    %v65 = vadd.f32 %v63, 1e-05
    %v66 = vrsqrt.pop %v64
    %v67 = vmul.f32 %v66, %v64
    %v68 = vmul.f32 %v67, %v66
    %v69 = vmul.f32 0.5, %v68
    %v70 = vsub.f32 1.5, %v69
    %v71 = vmul.f32 %v66, %v70
    %vm72 = vweird.f32 %v64
    %vm73 = vweird.f32 %v66
    %vm74 = vmor %vm72, %vm73
    %v75 = vsel %vm74, %v66, %v71
    %v76 = vrsqrt.pop %v65
    %v77 = vmul.f32 %v76, %v65
    %v78 = vmul.f32 %v77, %v76
    %v79 = vmul.f32 0.5, %v78
    %v80 = vsub.f32 1.5, %v79
    %v81 = vmul.f32 %v76, %v80
    %vm82 = vweird.f32 %v65
    %vm83 = vweird.f32 %v76
    %vm84 = vmor %vm82, %vm83
    %v85 = vsel %vm84, %v76, %v81
    %v86 = vmul.f32 %v52, %v75
    %v87 = vmul.f32 %v53, %v85
    %v89 = vperm.slane %v31, 0
    %v91 = vmul.f32 %v86, %v89
    %v92 = vmul.f32 %v87, %v89
    %v94 = vperm.slane %v32, 0
    %v96 = vadd.f32 %v91, %v94
    %v97 = vadd.f32 %v92, %v94
    %v99 = vperm.slane %v35, 0
    %v102 = vsel %vm36, %v96, 0
    %v105 = vsel %vm36, %v97, 0
    %107 = vmatpush.msra.mxu0 0.0
    %108 = vmatpush.msra.mxu0 0.0
    %109 = vmatpush.msra.mxu0 0.0
    %110 = vmatpush.msra.mxu0 0.0
    %111 = vmatpush.msra.mxu0 0.0
    %112 = vmatpush.msra.mxu0 0.0
    %113 = vmatpush.msra.mxu0 0.0
    %114 = vmatpush.msra.mxu0 0.0
    %115 = vmatpush.msra.mxu0 0.0
    %116 = vmatpush.msra.mxu0 0.0
    %117 = vmatpush.msra.mxu0 0.0
    %118 = vmatpush.msra.mxu0 0.0
    %119 = vmatpush.msra.mxu0 0.0
    %120 = vmatpush.msra.mxu0 0.0
    %121 = vmatpush.msra.mxu0 %v34
    %122 = vmatpush.msra.mxu0 %v33
    %123 = vmatmul.f32.gmra.mxu0 %v102
    %v124 = vpop.f32.mrf.mxu0
    %v125 = vadd.f32 %v99, %v124
    %126 = vmatmul.f32.gmra.mxu0 %v105
    %v127 = vpop.f32.mrf.mxu0
    %v128 = vadd.f32 %v99, %v127
    %129 = vdwg.mxu0
    %v130 = vmax.f32 %v125, 0.0
    %v131 = vmax.f32 %v128, 0.0
    %vm132 = vcmask 261120
    %v133 = vsel %vm132, %v130, 0.0
    %134 = vadd.xlane.f32.xlu0 %v133
    %v135 = vpop.xlane.xlu0 %134
    %v136 = vsel %vm132, %v131, 0.0
    %137 = vadd.xlane.f32.xlu0 %v136
    %v138 = vpop.xlane.xlu0 %137
    %v139 = vrcp.pop 32.0
    %v140 = vmul.f32 32.0, %v139
    %v141 = vsub.f32 1.0, %v140
    %v142 = vmul.f32 %v139, %v141
    %v143 = vadd.f32 %v139, %v142
    %vm144 = vweird.f32 %v139
    %v145 = vsel %vm144, %v139, %v143
    %v146 = vmul.f32 %v135, %v145
    %v147 = vmul.f32 %v138, %v145
    %v148 = vsub.f32 %v130, %v146
    %v149 = vsub.f32 %v131, %v147
    %v150 = vmul.f32 %v148, %v148
    %v151 = vmul.f32 %v149, %v149
    %v152 = vsel %vm132, %v150, 0.0
    %153 = vadd.xlane.f32.xlu0 %v152
    %v154 = vpop.xlane.xlu0 %153
    %v155 = vsel %vm132, %v151, 0.0
    %156 = vadd.xlane.f32.xlu0 %v155
    %v157 = vpop.xlane.xlu0 %156
    %v158 = vmul.f32 %v154, %v145
    %v159 = vmul.f32 %v157, %v145
    %v160 = vadd.f32 %v158, 1e-05
    %v161 = vadd.f32 %v159, 1e-05
    %v162 = vrsqrt.pop %v160
    %v163 = vmul.f32 %v162, %v160
    %v164 = vmul.f32 %v163, %v162
    %v165 = vmul.f32 0.5, %v164
    %v166 = vsub.f32 1.5, %v165
    %v167 = vmul.f32 %v162, %v166
    %vm168 = vweird.f32 %v160
    %vm169 = vweird.f32 %v162
    %vm170 = vmor %vm168, %vm169
    %v171 = vsel %vm170, %v162, %v167
    %v172 = vrsqrt.pop %v161
    %v173 = vmul.f32 %v172, %v161
    %v174 = vmul.f32 %v173, %v172
    %v175 = vmul.f32 0.5, %v174
    %v176 = vsub.f32 1.5, %v175
    %v177 = vmul.f32 %v172, %v176
    %vm178 = vweird.f32 %v161
    %vm179 = vweird.f32 %v172
    %vm180 = vmor %vm178, %vm179
    %v181 = vsel %vm180, %v172, %v177
    %v182 = vmul.f32 %v148, %v171
    %v183 = vmul.f32 %v149, %v181
    %v184 = vld [vmem:[%s5] sm:$0xff]
    %v185 = vld [vmem:[%s5 + $0x8] sm:$0xff]
    %v186 = vld [vmem:[%s5 + $0x10] sm:$0xff]
    %v187 = vld [vmem:[%s5 + $0x18] sm:$0xff]
    %v188 = vld [vmem:[%s6] sm:$0x1]
    %v190 = vperm.slane %v188, 0
    %v193 = vsel %vm132, %v182, 0
    %v196 = vsel %vm132, %v183, 0
    %198 = vmatpush.msra.mxu0 0.0
    %199 = vmatpush.msra.mxu0 0.0
    %200 = vmatpush.msra.mxu0 0.0
    %201 = vmatpush.msra.mxu0 0.0
    %202 = vmatpush.msra.mxu0 0.0
    %203 = vmatpush.msra.mxu0 0.0
    %204 = vmatpush.msra.mxu0 0.0
    %205 = vmatpush.msra.mxu0 0.0
    %206 = vmatpush.msra.mxu0 0.0
    %207 = vmatpush.msra.mxu0 0.0
    %208 = vmatpush.msra.mxu0 0.0
    %209 = vmatpush.msra.mxu0 0.0
    %210 = vmatpush.msra.mxu0 %v187
    %211 = vmatpush.msra.mxu0 %v186
    %212 = vmatpush.msra.mxu0 %v185
    %213 = vmatpush.msra.mxu0 %v184
    %214 = vmatmul.f32.gmra.mxu0 %v193
    %v215 = vpop.f32.mrf.mxu0
    %v216 = vadd.f32 %v190, %v215
    %217 = vmatmul.f32.gmra.mxu0 %v196
    %v218 = vpop.f32.mrf.mxu0
    %v219 = vadd.f32 %v190, %v218
    %220 = vdwg.mxu0
    %221 = vst [vmem:[%s7] sm:$0xff] %v216
    %222 = vst [vmem:[%s7 + $0x8] sm:$0xff] %v219
    %223 = vst [vmem:[#allocation2] sm:$0xff] 1.0
    %224 = vst [vmem:[#allocation2 + $0x8] sm:$0xff] 1.0
    // Predicated region
    $region30: #{decoder_forward.1} parent=1 // pred_check
      _
    $region31: #{decoder_forward.1} parent=1 // pred_check_branch
      %226 = sbr.rel (0) target = $region33
    $region32: #{decoder_forward.1} parent=1 // pred_region
      _
    $region33: #{decoder_forward.1} parent=1 // pred_fallthru
      _
    // Predicated region
    $region34: #{decoder_forward.1} parent=1 // pred_check
      _
    $region35: #{decoder_forward.1} parent=1 // pred_check_branch
      %228 = sbr.rel (0) target = $region37
    $region36: #{decoder_forward.1} parent=1 // pred_region
      %230 = vsyncadd [#allocation3], 0
      %s231 = sshll.u32 [#allocation2], 4
      %s232 = int_to_ptr.vmem [resolvable:$true] %s231
      %s233 = sshll.u32 %s8, 4
      %s234 = int_to_ptr.hbm [resolvable:$true] %s233
      %239 = dma.vmem_to_hbm [thread:$0]  %s232, 256, %s234, [#allocation3], 128, 128, 8
    $region37: #{decoder_forward.1} parent=1 // pred_fallthru
      _
    // Predicated region
    $region38: #{decoder_forward.1} parent=1 // pred_check
      _
    $region39: #{decoder_forward.1} parent=1 // pred_check_branch
      %241 = sbr.rel (0) target = $region41
    $region40: #{decoder_forward.1} parent=1 // pred_region
      _
    $region41: #{decoder_forward.1} parent=1 // pred_fallthru
      _
    // Predicated region
    $region42: #{decoder_forward.1} parent=1 // pred_check
      _
    $region43: #{decoder_forward.1} parent=1 // pred_check_branch
      %243 = sbr.rel (0) target = $region45
    $region44: #{decoder_forward.1} parent=1 // pred_region
      %245 = dma.done [#allocation3], 256
    $region45: #{decoder_forward.1} parent=1 // pred_fallthru
      _
    %246 = vsyncpa [#allocation3], 1

</llo_original>
